<compile_context>
chip_gen: v5e
topology: v5e:2x2
jax: 0.10.0
libtpu: 0.0.40
codegen_flags: <defaults>
</compile_context>

<pallas_src>
import math
import functools

import jax
import jax.numpy as jnp
from jax.experimental import pallas as pl
from jax.experimental.pallas import tpu as pltpu


def _round_up(n, m):
    return ((n + m - 1) // m) * m


def _pick_batch_block(batch, requested):
    """Largest divisor of `batch` that is <= requested (>=1)."""
    nb = max(1, min(requested, batch))
    while batch % nb:
        nb -= 1
    return nb


def _vmem_limit_bytes():
    cap = 64 * 1024 * 1024
    try:
        cap = int(getattr(pltpu.get_tpu_info(), "vmem_capacity_bytes", cap))
    except Exception:
        pass
    return min(int(cap * 0.85), 112 * 1024 * 1024)


def _layer_norm(x, g, b, eps=1e-5):
    # LayerNorm in float32, biased variance (matches torch.nn.LayerNorm).
    mu = jnp.mean(x, axis=-1, keepdims=True)
    var = jnp.mean((x - mu) ** 2, axis=-1, keepdims=True)
    return (x - mu) * jax.lax.rsqrt(var + eps) * g + b


# --------------------------------------------------------------------------- #
# Stage 1: patch embedding + class/positional embedding + ln_pre (per image)
# --------------------------------------------------------------------------- #
def _embed_kernel(patches_ref, convw_ref, cls_ref, pos_ref, g_ref, b_ref,
                  out_ref, *, seq_len, seq_pad, width):
    emb = jnp.dot(patches_ref[0], convw_ref[...],
                  preferred_element_type=jnp.float32)                 # (P, D) f32
    x0 = jnp.concatenate([cls_ref[...], emb], axis=0) + pos_ref[...]  # (S, D)
    x0 = _layer_norm(x0, g_ref[...], b_ref[...])
    if seq_pad > seq_len:
        x0 = jnp.concatenate(
            [x0, jnp.zeros((seq_pad - seq_len, width), jnp.float32)], axis=0)
    out_ref[0] = x0


# --------------------------------------------------------------------------- #
# Stage 2: transformer layers (weights streamed one layer per grid step),
#          ln_post + projection on the class token at the final layer step.
# --------------------------------------------------------------------------- #
def _layers_kernel(x0_ref,
                   ln1g_ref, ln1b_ref, wqkv_ref, bqkv_ref, wo_ref, bo_ref,
                   ln2g_ref, ln2b_ref, wfc_ref, bfc_ref, wpr_ref, bpr_ref,
                   lnpg_ref, lnpb_ref, proj_ref,
                   out_ref,
                   x_ref,
                   *, heads, width, seq_len, seq_pad, nb):
    D = width
    hd = D // heads
    bf16 = jnp.bfloat16
    l = pl.program_id(1)
    n_layers = pl.num_programs(1)
    M = nb * seq_pad

    # ---- initialize the activation carry at the first layer step ------------
    @pl.when(l == 0)
    def _init():
        x_ref[...] = x0_ref[...]

    x2 = x_ref[...].reshape(M, D)                                     # (M, D) f32

    # ---- residual attention --------------------------------------------------
    h = _layer_norm(x2, ln1g_ref[0], ln1b_ref[0])
    # 1/sqrt(hd) is pre-folded into the Q columns of wqkv/bqkv on the host.
    qkv = jnp.dot(h.astype(bf16), wqkv_ref[0],
                  preferred_element_type=jnp.float32) + bqkv_ref[0]   # (M, 3D) f32
    qkv = qkv.astype(bf16)

    if seq_pad > seq_len:
        kmask = jax.lax.broadcasted_iota(jnp.int32, (1, 1, seq_pad), 2) < seq_len

    # Per-image attention (all heads batched) — intermediates stay small while
    # the weight matmuls above amortize over all NB images.
    ctx_list = []
    for b in range(nb):                                  # nb is a small static int
        r0 = b * seq_pad
        q3 = jnp.stack([qkv[r0:r0 + seq_pad, i * hd:(i + 1) * hd]
                        for i in range(heads)], axis=0)               # (H, S, hd)
        k3 = jnp.stack([qkv[r0:r0 + seq_pad, D + i * hd:D + (i + 1) * hd]
                        for i in range(heads)], axis=0)
        v3 = jnp.stack([qkv[r0:r0 + seq_pad, 2 * D + i * hd:2 * D + (i + 1) * hd]
                        for i in range(heads)], axis=0)

        s = jnp.einsum('hqd,hkd->hqk', q3, k3,
                       preferred_element_type=jnp.float32)            # (H, S, S) f32
        if seq_pad > seq_len:
            # mask padded key columns so real queries never attend to padding
            s = jnp.where(kmask, s, -1e30)
        s = s - jnp.max(s, axis=-1, keepdims=True)
        p = jnp.exp(s)
        # approx reciprocal (~2^-12 rel err) runs on the EUP slot; well within tol.
        p = p * pl.reciprocal(jnp.sum(p, axis=-1, keepdims=True), approx=True)
        ctx = jnp.einsum('hqk,hkd->hqd', p.astype(bf16), v3,
                         preferred_element_type=jnp.float32)          # (H, S, hd)
        ctx_list.append(jnp.concatenate([ctx[i] for i in range(heads)], axis=-1))
    attn = jnp.concatenate(ctx_list, axis=0)                          # (M, D) f32

    attn = jnp.dot(attn.astype(bf16), wo_ref[0],
                   preferred_element_type=jnp.float32) + bo_ref[0]
    x2 = x2 + attn

    # ---- residual MLP with QuickGELU -----------------------------------------
    h = _layer_norm(x2, ln2g_ref[0], ln2b_ref[0])
    h = jnp.dot(h.astype(bf16), wfc_ref[0],
                preferred_element_type=jnp.float32) + bfc_ref[0]      # (M, 4D)
    h = h * jax.nn.sigmoid(1.702 * h)
    h = jnp.dot(h.astype(bf16), wpr_ref[0],
                preferred_element_type=jnp.float32) + bpr_ref[0]      # (M, D)
    x2 = x2 + h
    x_ref[...] = x2.reshape(nb, seq_pad, D)

    # ---- epilogue: ln_post on the class token + projection -------------------
    @pl.when(l == n_layers - 1)
    def _final():
        cls_rows = jnp.concatenate(
            [x2[b * seq_pad:b * seq_pad + 1, :] for b in range(nb)], axis=0)  # (nb, D)
        tok = _layer_norm(cls_rows, lnpg_ref[...], lnpb_ref[...])
        out_ref[...] = jnp.dot(tok.astype(bf16), proj_ref[...],
                               preferred_element_type=jnp.float32)    # (nb, out)


def vision_transformer(x, params, *, patch_size, width, layers, heads, output_dim,
                       batch_block=4):
    """x: (B, C, H, W) float32, NCHW exactly like the PyTorch module.

    batch_block (NB): images processed per layer-grid step (weight reuse).
    On v7x prefer NB such that B // NB stays >= 2 so megacore shards both TCs.
    """
    B, C, H, W = x.shape
    ps = patch_size
    gh, gw = H // ps, W // ps
    P = gh * gw
    Cp = C * ps * ps
    S = P + 1
    S_pad = _round_up(S, 8)          # only sublane padding; no dead 128-pad rows
    D = width
    hd = D // heads
    nb = _pick_batch_block(B, batch_block)
    bf16, f32 = jnp.bfloat16, jnp.float32
    vmem_limit = _vmem_limit_bytes()

    # (B,C,H,W) -> (B, P, C*ps*ps), flattened in (c, kh, kw) order to match the
    # torch conv weight layout (out, in, kh, kw).
    patches = x.reshape(B, C, gh, ps, gw, ps).transpose(0, 2, 4, 1, 3, 5)
    patches = patches.reshape(B, P, Cp).astype(f32)

    conv_w = params['conv_w'].T.astype(f32)                           # (Cp, D)
    cls = params['cls'].astype(f32)                                   # (1, D)
    pos = params['pos'].astype(f32)                                   # (S, D)
    ln_pre_g = params['ln_pre_g'].astype(f32)
    ln_pre_b = params['ln_pre_b'].astype(f32)

    # ---- stage 1: small Pallas call for patch embed + cls/pos + ln_pre -------
    x0 = pl.pallas_call(
        functools.partial(_embed_kernel, seq_len=S, seq_pad=S_pad, width=D),
        out_shape=jax.ShapeDtypeStruct((B, S_pad, D), f32),
        grid=(B,),
        in_specs=[
            pl.BlockSpec((1, P, Cp), lambda b: (b, 0, 0)),
            pl.BlockSpec((Cp, D), lambda b: (0, 0)),
            pl.BlockSpec((1, D), lambda b: (0, 0)),
            pl.BlockSpec((S, D), lambda b: (0, 0)),
            pl.BlockSpec((1, D), lambda b: (0, 0)),
            pl.BlockSpec((1, D), lambda b: (0, 0)),
        ],
        out_specs=pl.BlockSpec((1, S_pad, D), lambda b: (b, 0, 0)),
        compiler_params=pltpu.CompilerParams(
            dimension_semantics=("parallel",),
            vmem_limit_bytes=vmem_limit),
    )(patches, conv_w, cls, pos, ln_pre_g, ln_pre_b)

    # ---- host-side weight prep (pre-transpose to (in, out), cast to bf16) ----
    # Fold 1/sqrt(hd) into the Q output columns of the QKV projection.
    scale_vec = jnp.concatenate(
        [jnp.full((D,), hd ** -0.5, f32), jnp.ones((2 * D,), f32)])   # (3D,)
    w_qkv = (params['w_qkv'].transpose(0, 2, 1) * scale_vec).astype(bf16)  # (L,D,3D)
    b_qkv = (params['b_qkv'] * scale_vec).reshape(layers, 1, 3 * D).astype(f32)
    ln1_g = params['ln1_g'].reshape(layers, 1, D).astype(f32)
    ln1_b = params['ln1_b'].reshape(layers, 1, D).astype(f32)
    w_o = params['w_o'].transpose(0, 2, 1).astype(bf16)               # (L, D, D)
    b_o = params['b_o'].reshape(layers, 1, D).astype(f32)
    ln2_g = params['ln2_g'].reshape(layers, 1, D).astype(f32)
    ln2_b = params['ln2_b'].reshape(layers, 1, D).astype(f32)
    w_fc = params['w_fc'].transpose(0, 2, 1).astype(bf16)             # (L, D, 4D)
    b_fc = params['b_fc'].reshape(layers, 1, 4 * D).astype(f32)
    w_pr = params['w_pr'].transpose(0, 2, 1).astype(bf16)             # (L, 4D, D)
    b_pr = params['b_pr'].reshape(layers, 1, D).astype(f32)
    ln_post_g = params['ln_post_g'].astype(f32)
    ln_post_b = params['ln_post_b'].astype(f32)
    proj = params['proj'].astype(bf16)                                # (D, out)

    kernel = functools.partial(_layers_kernel, heads=heads, width=D,
                               seq_len=S, seq_pad=S_pad, nb=nb)

    def per_layer(shape):
        # stream one layer's block per "arbitrary" grid step (double-buffered)
        return pl.BlockSpec((1,) + tuple(shape[1:]), lambda b, l: (l, 0, 0))

    def const2(shape):
        # block index constant over (b, l): fetched once, stays VMEM-resident
        return pl.BlockSpec(shape, lambda b, l: (0, 0))

    in_specs = [
        pl.BlockSpec((nb, S_pad, D), lambda b, l: (b, 0, 0)),         # x0 slab
        per_layer(ln1_g.shape), per_layer(ln1_b.shape),
        per_layer(w_qkv.shape), per_layer(b_qkv.shape),
        per_layer(w_o.shape), per_layer(b_o.shape),
        per_layer(ln2_g.shape), per_layer(ln2_b.shape),
        per_layer(w_fc.shape), per_layer(b_fc.shape),
        per_layer(w_pr.shape), per_layer(b_pr.shape),
        const2(ln_post_g.shape), const2(ln_post_b.shape), const2(proj.shape),
    ]

    return pl.pallas_call(
        kernel,
        out_shape=jax.ShapeDtypeStruct((B, output_dim), f32),
        grid=(B // nb, layers),
        in_specs=in_specs,
        out_specs=pl.BlockSpec((nb, output_dim), lambda b, l: (b, 0)),
        scratch_shapes=[pltpu.VMEM((nb, S_pad, D), f32)],             # x carry
        compiler_params=pltpu.CompilerParams(
            dimension_semantics=("parallel", "arbitrary"),
            vmem_limit_bytes=vmem_limit),
    )(x0, ln1_g, ln1_b, w_qkv, b_qkv, w_o, b_o,
      ln2_g, ln2_b, w_fc, b_fc, w_pr, b_pr,
      ln_post_g, ln_post_b, proj)


def init_params(key, *, in_channels, input_resolution, patch_size, width,
                layers, heads, output_dim):
    ps = patch_size
    S = (input_resolution // ps) ** 2 + 1
    D = width
    scale = D ** -0.5
    ks = jax.random.split(key, 12)
    f32 = jnp.float32
    return {
        'conv_w': jax.random.normal(ks[0], (D, in_channels * ps * ps), f32) * 0.02,
        'cls': scale * jax.random.normal(ks[1], (1, D), f32),
        'pos': scale * jax.random.normal(ks[2], (S, D), f32),
        'ln_pre_g': jnp.ones((1, D), f32),
        'ln_pre_b': jnp.zeros((1, D), f32),
        'ln1_g': jnp.ones((layers, D), f32),
        'ln1_b': jnp.zeros((layers, D), f32),
        'w_qkv': jax.random.normal(ks[3], (layers, 3 * D, D), f32) * scale,
        'b_qkv': jax.random.normal(ks[4], (layers, 3 * D), f32) * 0.02,
        'w_o': jax.random.normal(ks[5], (layers, D, D), f32) * scale,
        'b_o': jax.random.normal(ks[6], (layers, D), f32) * 0.02,
        'ln2_g': jnp.ones((layers, D), f32),
        'ln2_b': jnp.zeros((layers, D), f32),
        'w_fc': jax.random.normal(ks[7], (layers, 4 * D, D), f32) * scale,
        'b_fc': jax.random.normal(ks[8], (layers, 4 * D), f32) * 0.02,
        'w_pr': jax.random.normal(ks[9], (layers, D, 4 * D), f32) * scale,
        'b_pr': jax.random.normal(ks[10], (layers, D), f32) * 0.02,
        'ln_post_g': jnp.ones((1, D), f32),
        'ln_post_b': jnp.zeros((1, D), f32),
        'proj': scale * jax.random.normal(ks[11], (D, output_dim), f32),
    }


def vit_reference(x, params, *, patch_size, width, layers, heads, output_dim):
    """Pure-JAX f32 reference mirroring the PyTorch forward (token_type='class embedding')."""
    B, C, H, W = x.shape
    ps = patch_size
    gh, gw = H // ps, W // ps
    P = gh * gw
    patches = x.reshape(B, C, gh, ps, gw, ps).transpose(0, 2, 4, 1, 3, 5)
    patches = patches.reshape(B, P, C * ps * ps)
    emb = jnp.einsum('bpc,dc->bpd', patches, params['conv_w'])
    cls = jnp.broadcast_to(params['cls'][None], (B, 1, width))
    xx = jnp.concatenate([cls, emb], axis=1) + params['pos'][None]

    def ln(t, g, b):
        mu = t.mean(-1, keepdims=True)
        var = ((t - mu) ** 2).mean(-1, keepdims=True)
        return (t - mu) / jnp.sqrt(var + 1e-5) * g + b

    xx = ln(xx, params['ln_pre_g'][0], params['ln_pre_b'][0])
    hd = width // heads
    for l in range(layers):
        h = ln(xx, params['ln1_g'][l], params['ln1_b'][l])
        qkv = jnp.einsum('bsd,ed->bse', h, params['w_qkv'][l]) + params['b_qkv'][l]
        q, k, v = jnp.split(qkv, 3, axis=-1)
        q = q.reshape(B, -1, heads, hd).transpose(0, 2, 1, 3) / math.sqrt(hd)
        k = k.reshape(B, -1, heads, hd).transpose(0, 2, 1, 3)
        v = v.reshape(B, -1, heads, hd).transpose(0, 2, 1, 3)
        s = jnp.einsum('bhqe,bhke->bhqk', q, k)
        p = jax.nn.softmax(s, axis=-1)
        o = jnp.einsum('bhqk,bhke->bhqe', p, v).transpose(0, 2, 1, 3).reshape(B, -1, width)
        o = jnp.einsum('bsd,ed->bse', o, params['w_o'][l]) + params['b_o'][l]
        xx = xx + o
        h = ln(xx, params['ln2_g'][l], params['ln2_b'][l])
        h = jnp.einsum('bsd,ed->bse', h, params['w_fc'][l]) + params['b_fc'][l]
        h = h * jax.nn.sigmoid(1.702 * h)
        h = jnp.einsum('bse,de->bsd', h, params['w_pr'][l]) + params['b_pr'][l]
        xx = xx + h
    tok = ln(xx[:, 0, :], params['ln_post_g'][0], params['ln_post_b'][0])
    return tok @ params['proj']


if __name__ == "__main__":
    # Small shapes consistent with the module.
    in_channels, input_resolution, patch_size = 4, 16, 4
    width, layers, heads, output_dim = 32, 2, 4, 16   # seq = 16 patches + 1 cls = 17
    B = 2

    key = jax.random.PRNGKey(0)
    kx, kp = jax.random.split(key)
    x = jax.random.normal(kx, (B, in_channels, input_resolution, input_resolution),
                          jnp.float32)
    params = init_params(kp, in_channels=in_channels,
                         input_resolution=input_resolution, patch_size=patch_size,
                         width=width, layers=layers, heads=heads,
                         output_dim=output_dim)

    out = vision_transformer(x, params, patch_size=patch_size, width=width,
                             layers=layers, heads=heads, output_dim=output_dim,
                             batch_block=2)           # exercise NB=2 batch-blocking
    out = jax.block_until_ready(out)

    ref = vit_reference(x, params, patch_size=patch_size, width=width,
                        layers=layers, heads=heads, output_dim=output_dim)
    assert out.shape == (B, output_dim), out.shape
    max_err = float(jnp.max(jnp.abs(out - ref)))
    assert jnp.allclose(out, ref, atol=5e-2, rtol=5e-2), max_err
    print("KERNEL_OK")
</pallas_src>

<mosaic_0001>
module attributes {stable_mosaic.version = 11 : i64} {
  func.func @_embed_kernel(%arg0: i32, %arg1: memref<1x16x64xf32, #tpu.memory_space<vmem>>, %arg2: memref<64x32xf32, #tpu.memory_space<vmem>>, %arg3: memref<1x32xf32, #tpu.memory_space<vmem>>, %arg4: memref<17x32xf32, #tpu.memory_space<vmem>>, %arg5: memref<1x32xf32, #tpu.memory_space<vmem>>, %arg6: memref<1x32xf32, #tpu.memory_space<vmem>>, %arg7: memref<1x24x32xf32, #tpu.memory_space<vmem>>) attributes {dimension_semantics = [#tpu.dimension_semantics<parallel>], iteration_bounds = array<i64: 2>, scalar_prefetch = 0 : i64, scratch_operands = 0 : i64, tpu.core_type = #tpu.core_type<tc>, window_params = [{transform_indices = @transform_0, window_bounds = array<i64: 1, 16, 64>}, {pipeline_mode = #tpu.pipeline_mode<synchronous>, transform_indices = @transform_1, window_bounds = array<i64: 64, 32>}, {pipeline_mode = #tpu.pipeline_mode<synchronous>, transform_indices = @transform_2, window_bounds = array<i64: 1, 32>}, {pipeline_mode = #tpu.pipeline_mode<synchronous>, transform_indices = @transform_3, window_bounds = array<i64: 17, 32>}, {pipeline_mode = #tpu.pipeline_mode<synchronous>, transform_indices = @transform_4, window_bounds = array<i64: 1, 32>}, {pipeline_mode = #tpu.pipeline_mode<synchronous>, transform_indices = @transform_5, window_bounds = array<i64: 1, 32>}, {transform_indices = @transform_6, window_bounds = array<i64: 1, 24, 32>}]} {
    %c0 = arith.constant 0 : index
    %c0_0 = arith.constant 0 : index
    %c0_1 = arith.constant 0 : index
    %0 = vector.load %arg1[%c0, %c0_0, %c0_1] : memref<1x16x64xf32, #tpu.memory_space<vmem>>, vector<1x16x64xf32>
    %1 = vector.shape_cast %0 : vector<1x16x64xf32> to vector<16x64xf32>
    %c0_2 = arith.constant 0 : index
    %c0_3 = arith.constant 0 : index
    %2 = vector.load %arg2[%c0_2, %c0_3] : memref<64x32xf32, #tpu.memory_space<vmem>>, vector<64x32xf32>
    %cst = arith.constant dense<0.000000e+00> : vector<16x32xf32>
    %3 = tpu.matmul %1, %2, %cst {dimension_numbers = #tpu.dot_dimension_numbers<[1], [0], [0], [1], [0, 0, 1, 1], [], []>} : vector<16x64xf32>, vector<64x32xf32>, vector<16x32xf32> -> vector<16x32xf32>
    %c0_4 = arith.constant 0 : index
    %c0_5 = arith.constant 0 : index
    %4 = vector.load %arg3[%c0_4, %c0_5] : memref<1x32xf32, #tpu.memory_space<vmem>>, vector<1x32xf32>
    %5 = tpu.concatenate %4, %3 in 0 : vector<1x32xf32>, vector<16x32xf32> -> vector<17x32xf32>
    %c0_6 = arith.constant 0 : index
    %c0_7 = arith.constant 0 : index
    %6 = vector.load %arg4[%c0_6, %c0_7] : memref<17x32xf32, #tpu.memory_space<vmem>>, vector<17x32xf32>
    %7 = arith.addf %5, %6 : vector<17x32xf32>
    %c0_8 = arith.constant 0 : index
    %c0_9 = arith.constant 0 : index
    %8 = vector.load %arg5[%c0_8, %c0_9] : memref<1x32xf32, #tpu.memory_space<vmem>>, vector<1x32xf32>
    %c0_10 = arith.constant 0 : index
    %c0_11 = arith.constant 0 : index
    %9 = vector.load %arg6[%c0_10, %c0_11] : memref<1x32xf32, #tpu.memory_space<vmem>>, vector<1x32xf32>
    %cst_12 = arith.constant dense<0.000000e+00> : vector<17xf32>
    %10 = vector.multi_reduction <add>, %7, %cst_12 [1] : vector<17x32xf32> to vector<17xf32>
    %11 = vector.shape_cast %10 : vector<17xf32> to vector<17x1xf32>
    %cst_13 = arith.constant 3.200000e+01 : f32
    %12 = vector.broadcast %cst_13 : f32 to vector<17x1xf32>
    %13 = arith.divf %11, %12 : vector<17x1xf32>
    %14 = vector.broadcast %13 : vector<17x1xf32> to vector<17x32xf32>
    %15 = arith.subf %7, %14 : vector<17x32xf32>
    %16 = arith.mulf %15, %15 : vector<17x32xf32>
    %cst_14 = arith.constant dense<0.000000e+00> : vector<17xf32>
    %17 = vector.multi_reduction <add>, %16, %cst_14 [1] : vector<17x32xf32> to vector<17xf32>
    %18 = vector.shape_cast %17 : vector<17xf32> to vector<17x1xf32>
    %cst_15 = arith.constant 3.200000e+01 : f32
    %19 = vector.broadcast %cst_15 : f32 to vector<17x1xf32>
    %20 = arith.divf %18, %19 : vector<17x1xf32>
    %21 = vector.broadcast %13 : vector<17x1xf32> to vector<17x32xf32>
    %22 = arith.subf %7, %21 : vector<17x32xf32>
    %cst_16 = arith.constant 9.99999974E-6 : f32
    %23 = vector.broadcast %cst_16 : f32 to vector<17x1xf32>
    %24 = arith.addf %20, %23 : vector<17x1xf32>
    %25 = math.rsqrt %24 : vector<17x1xf32>
    %26 = vector.broadcast %25 : vector<17x1xf32> to vector<17x32xf32>
    %27 = arith.mulf %22, %26 : vector<17x32xf32>
    %28 = vector.broadcast %8 : vector<1x32xf32> to vector<17x32xf32>
    %29 = arith.mulf %27, %28 : vector<17x32xf32>
    %30 = vector.broadcast %9 : vector<1x32xf32> to vector<17x32xf32>
    %31 = arith.addf %29, %30 : vector<17x32xf32>
    %cst_17 = arith.constant 0.000000e+00 : f32
    %32 = vector.broadcast %cst_17 : f32 to vector<7x32xf32>
    %33 = tpu.concatenate %31, %32 in 0 : vector<17x32xf32>, vector<7x32xf32> -> vector<24x32xf32>
    %c0_18 = arith.constant 0 : index
    %c0_19 = arith.constant 0 : index
    %c0_20 = arith.constant 0 : index
    %34 = vector.load %arg7[%c0_18, %c0_19, %c0_20] : memref<1x24x32xf32, #tpu.memory_space<vmem>>, vector<1x24x32xf32>
    %35 = vector.shape_cast %34 : vector<1x24x32xf32> to vector<24x32xf32>
    %36 = vector.shape_cast %33 : vector<24x32xf32> to vector<1x24x32xf32>
    tpu.vector_store %arg7[%c0_18, %c0_19, %c0_20], %36 {strides = array<i32>} : memref<1x24x32xf32, #tpu.memory_space<vmem>>, vector<1x24x32xf32>,
    return
  }
  func.func @transform_0(%arg0: i32) -> (i32, i32, i32) {
    %c0_i32 = arith.constant 0 : i32
    %c0_i32_0 = arith.constant 0 : i32
    %c0_i32_1 = arith.constant 0 : i32
    return %arg0, %c0_i32, %c0_i32_0 : i32, i32, i32
  }
  func.func @transform_1(%arg0: i32) -> (i32, i32) {
    %c0_i32 = arith.constant 0 : i32
    %c0_i32_0 = arith.constant 0 : i32
    %c0_i32_1 = arith.constant 0 : i32
    return %c0_i32, %c0_i32_0 : i32, i32
  }
  func.func @transform_2(%arg0: i32) -> (i32, i32) {
    %c0_i32 = arith.constant 0 : i32
    %c0_i32_0 = arith.constant 0 : i32
    %c0_i32_1 = arith.constant 0 : i32
    return %c0_i32, %c0_i32_0 : i32, i32
  }
  func.func @transform_3(%arg0: i32) -> (i32, i32) {
    %c0_i32 = arith.constant 0 : i32
    %c0_i32_0 = arith.constant 0 : i32
    %c0_i32_1 = arith.constant 0 : i32
    return %c0_i32, %c0_i32_0 : i32, i32
  }
  func.func @transform_4(%arg0: i32) -> (i32, i32) {
    %c0_i32 = arith.constant 0 : i32
    %c0_i32_0 = arith.constant 0 : i32
    %c0_i32_1 = arith.constant 0 : i32
    return %c0_i32, %c0_i32_0 : i32, i32
  }
  func.func @transform_5(%arg0: i32) -> (i32, i32) {
    %c0_i32 = arith.constant 0 : i32
    %c0_i32_0 = arith.constant 0 : i32
    %c0_i32_1 = arith.constant 0 : i32
    return %c0_i32, %c0_i32_0 : i32, i32
  }
  func.func @transform_6(%arg0: i32) -> (i32, i32, i32) {
    %c0_i32 = arith.constant 0 : i32
    %c0_i32_0 = arith.constant 0 : i32
    %c0_i32_1 = arith.constant 0 : i32
    return %arg0, %c0_i32, %c0_i32_0 : i32, i32, i32
  }
}

</mosaic_0001>

<llo_original>
// kernel: tpu_custom_call.1
$region0: #{tpu_custom_call.1}
  #allocation0 [shape = 'u32[]', space=smem, size = 0x4, offset = 0x4, fixed_abs, tag = 'smem constant byte address 0x4 - core index']
  #allocation1 [shape = 'u32[72,128]{1,0:T(1,128)}', space=vmem, size = 0x9000, scoped, tag = 'internal scratch']
  %s0 = inlined_call_operand.vmem [shape: f32[2,16,64], index: 0, kind: input, shape index: {}]
  %s1 = inlined_call_operand.vmem [shape: f32[64,32], index: 1, kind: input, shape index: {}]
  %s2 = inlined_call_operand.vmem [shape: f32[1,32], index: 2, kind: input, shape index: {}]
  %s3 = inlined_call_operand.vmem [shape: f32[17,32], index: 3, kind: input, shape index: {}]
  %s4 = inlined_call_operand.vmem [shape: f32[1,32], index: 4, kind: input, shape index: {}]
  %s5 = inlined_call_operand.vmem [shape: f32[1,32], index: 5, kind: input, shape index: {}]
  %s6 = inlined_call_operand.hbm [shape: f32[2,24,32], index: 6, kind: output, shape index: {}]
  %s7 = sld [smem:[#allocation0]]
  $region57: #{tpu_custom_call.1} parent=0
    _
  %s9 = ssub.s32 1, %s7
  %s10 = scalar_select 0, %s9, %s7
  $region1: #{tpu_custom_call.1} parent=0
    #allocation2 [shape = 'u8[24576]{0}', space=vmem, size = 0x6000, scoped, tag = 'output window, operand 0']
    #allocation3 [shape = 's32[2]{0}', space=sflag, size = 0x8, scoped, tag = 'scoped memory for tpu_custom_call.1']
    %11 = vsyncpa [#allocation3], 0
    %s12 = scalar_lea.sflag [#allocation3], 1
    %13 = vsyncpa %s12, 0
    loop: start=0, step=1, limit=4
    $region2: #{tpu_custom_call.1} parent=1 // loop_pre_header
      _
    $region3: #{tpu_custom_call.1} parent=1 // loop_header
      %s15 = sphi 0, %s19
      %p16 = scmp.ge.s32.totalorder %s15, 4
      %s25 = sphi 0, %s27
      %s28 = sphi 0, %s25
      %s29 = sphi 0, %s28
      %s45 = sphi 0, %s29
      %s49 = sphi 0, %s49
      %s51 = sphi 0, %s49
      %s52 = sphi 0, %s51
      %s66 = sphi 0, %s52
      %s70 = sphi 0, %s70
      %s72 = sphi 0, %s70
      %s73 = sphi 0, %s72
      %s87 = sphi 0, %s73
      %s91 = sphi 0, %s91
      %s93 = sphi 0, %s91
      %s94 = sphi 0, %s93
      %s108 = sphi 0, %s94
      %s112 = sphi 0, %s112
      %s114 = sphi 0, %s112
      %s115 = sphi 0, %s114
      %s129 = sphi 0, %s115
      %s133 = sphi 0, %s133
      %s135 = sphi 0, %s133
      %s136 = sphi 0, %s135
      %s150 = sphi 0, %s136
      %s156 = sphi 0, %s158
      %s159 = sphi 0, %s156
      %s160 = sphi 0, %s159
      %s176 = sphi 0, %s160
    $region4: #{tpu_custom_call.1} parent=1 // loop_header_branch
      %18 = sbr.rel (%p16) target = $region8
    $region5: #{tpu_custom_call.1} parent=1 // loop_body
      %s20 = ssub.s32 %s15, 1
      %s21 = ssub.s32 %s15, 2
      %s22 = sadd.s32 %s15, 1
      %s23 = ssub.s32 %s15, %s22
      %p24 = scmp.eq.s32.totalorder %s23, 0
      %s26 = sadd.s32 %s25, 1
      %s27 = scalar_select %p24, %s25, %s26
      %p30 = pneg %p24
      %p31 = scmp.eq.s32.totalorder %s15, 1
      %p32 = por %p30, %p31
      %p33 = scmp.ne.s32.totalorder %s25, %s28
      %p34 = scmp.eq.s32.totalorder %s15, 0
      %p35 = por %p33, %p34
      %p36 = scmp.ne.s32.totalorder %s25, %s28
      %p37 = scmp.eq.s32.totalorder %s20, 1
      %p38 = por %p36, %p37
      %p39 = scmp.ne.s32.totalorder %s28, %s29
      %p40 = scmp.eq.s32.totalorder %s20, 0
      %p41 = por %p39, %p40
      %p42 = scmp.ne.s32.totalorder %s28, %s29
      %p43 = scmp.eq.s32.totalorder %s21, 1
      %p44 = por %p42, %p43
      %p46 = scmp.ne.s32.totalorder %s29, %s45
      %p47 = scmp.eq.s32.totalorder %s21, 0
      %p48 = por %p46, %p47
      %s50 = sadd.s32 %s49, 1
      %p53 = scmp.eq.s32.totalorder %s15, 1
      %p54 = scmp.ne.s32.totalorder %s49, %s51
      %p55 = scmp.eq.s32.totalorder %s15, 0
      %p56 = por %p54, %p55
      %p57 = scmp.ne.s32.totalorder %s49, %s51
      %p58 = scmp.eq.s32.totalorder %s20, 1
      %p59 = por %p57, %p58
      %p60 = scmp.ne.s32.totalorder %s51, %s52
      %p61 = scmp.eq.s32.totalorder %s20, 0
      %p62 = por %p60, %p61
      %p63 = scmp.ne.s32.totalorder %s51, %s52
      %p64 = scmp.eq.s32.totalorder %s21, 1
      %p65 = por %p63, %p64
      %p67 = scmp.ne.s32.totalorder %s52, %s66
      %p68 = scmp.eq.s32.totalorder %s21, 0
      %p69 = por %p67, %p68
      %s71 = sadd.s32 %s70, 1
      %p74 = scmp.eq.s32.totalorder %s15, 1
      %p75 = scmp.ne.s32.totalorder %s70, %s72
      %p76 = scmp.eq.s32.totalorder %s15, 0
      %p77 = por %p75, %p76
      %p78 = scmp.ne.s32.totalorder %s70, %s72
      %p79 = scmp.eq.s32.totalorder %s20, 1
      %p80 = por %p78, %p79
      %p81 = scmp.ne.s32.totalorder %s72, %s73
      %p82 = scmp.eq.s32.totalorder %s20, 0
      %p83 = por %p81, %p82
      %p84 = scmp.ne.s32.totalorder %s72, %s73
      %p85 = scmp.eq.s32.totalorder %s21, 1
      %p86 = por %p84, %p85
      %p88 = scmp.ne.s32.totalorder %s73, %s87
      %p89 = scmp.eq.s32.totalorder %s21, 0
      %p90 = por %p88, %p89
      %s92 = sadd.s32 %s91, 1
      %p95 = scmp.eq.s32.totalorder %s15, 1
      %p96 = scmp.ne.s32.totalorder %s91, %s93
      %p97 = scmp.eq.s32.totalorder %s15, 0
      %p98 = por %p96, %p97
      %p99 = scmp.ne.s32.totalorder %s91, %s93
      %p100 = scmp.eq.s32.totalorder %s20, 1
      %p101 = por %p99, %p100
      %p102 = scmp.ne.s32.totalorder %s93, %s94
      %p103 = scmp.eq.s32.totalorder %s20, 0
      %p104 = por %p102, %p103
      %p105 = scmp.ne.s32.totalorder %s93, %s94
      %p106 = scmp.eq.s32.totalorder %s21, 1
      %p107 = por %p105, %p106
      %p109 = scmp.ne.s32.totalorder %s94, %s108
      %p110 = scmp.eq.s32.totalorder %s21, 0
      %p111 = por %p109, %p110
      %s113 = sadd.s32 %s112, 1
      %p116 = scmp.eq.s32.totalorder %s15, 1
      %p117 = scmp.ne.s32.totalorder %s112, %s114
      %p118 = scmp.eq.s32.totalorder %s15, 0
      %p119 = por %p117, %p118
      %p120 = scmp.ne.s32.totalorder %s112, %s114
      %p121 = scmp.eq.s32.totalorder %s20, 1
      %p122 = por %p120, %p121
      %p123 = scmp.ne.s32.totalorder %s114, %s115
      %p124 = scmp.eq.s32.totalorder %s20, 0
      %p125 = por %p123, %p124
      %p126 = scmp.ne.s32.totalorder %s114, %s115
      %p127 = scmp.eq.s32.totalorder %s21, 1
      %p128 = por %p126, %p127
      %p130 = scmp.ne.s32.totalorder %s115, %s129
      %p131 = scmp.eq.s32.totalorder %s21, 0
      %p132 = por %p130, %p131
      %s134 = sadd.s32 %s133, 1
      %p137 = scmp.eq.s32.totalorder %s15, 1
      %p138 = scmp.ne.s32.totalorder %s133, %s135
      %p139 = scmp.eq.s32.totalorder %s15, 0
      %p140 = por %p138, %p139
      %p141 = scmp.ne.s32.totalorder %s133, %s135
      %p142 = scmp.eq.s32.totalorder %s20, 1
      %p143 = por %p141, %p142
      %p144 = scmp.ne.s32.totalorder %s135, %s136
      %p145 = scmp.eq.s32.totalorder %s20, 0
      %p146 = por %p144, %p145
      %p147 = scmp.ne.s32.totalorder %s135, %s136
      %p148 = scmp.eq.s32.totalorder %s21, 1
      %p149 = por %p147, %p148
      %p151 = scmp.ne.s32.totalorder %s136, %s150
      %p152 = scmp.eq.s32.totalorder %s21, 0
      %p153 = por %p151, %p152
      %s154 = ssub.s32 %s15, %s22
      %p155 = scmp.eq.s32.totalorder %s154, 0
      %s157 = sadd.s32 %s156, 1
      %s158 = scalar_select %p155, %s156, %s157
      %p161 = pneg %p155
      %p162 = scmp.eq.s32.totalorder %s15, 1
      %p163 = por %p161, %p162
      %p164 = scmp.ne.s32.totalorder %s156, %s159
      %p165 = scmp.eq.s32.totalorder %s15, 0
      %p166 = por %p164, %p165
      %p167 = scmp.ne.s32.totalorder %s156, %s159
      %p168 = scmp.eq.s32.totalorder %s20, 1
      %p169 = por %p167, %p168
      %p170 = scmp.ne.s32.totalorder %s159, %s160
      %p171 = scmp.eq.s32.totalorder %s20, 0
      %p172 = por %p170, %p171
      %p173 = scmp.ne.s32.totalorder %s159, %s160
      %p174 = scmp.eq.s32.totalorder %s21, 1
      %p175 = por %p173, %p174
      %p177 = scmp.ne.s32.totalorder %s160, %s176
      %p178 = scmp.eq.s32.totalorder %s21, 0
      %p179 = por %p177, %p178
      %p180 = scmp.le.s32.totalorder 1, %s15
      %p181 = scmp.lt.s32.totalorder %s15, 3
      %p182 = pnand %p180, %p181
      %p183 = pneg %p182
      // Predicated region
      $region9: #{tpu_custom_call.1} parent=5 // pred_check
        _
      $region10: #{tpu_custom_call.1} parent=5 // pred_check_branch
        %185 = sbr.rel (%p182) target = $region12
      $region11: #{tpu_custom_call.1} parent=5 // pred_region
        %s186 = ssub.s32 %s15, 1
        // Predicated region
        $region13: #{tpu_custom_call.1} parent=11 // pred_check
          %p187 = pneg %p62
        $region14: #{tpu_custom_call.1} parent=11 // pred_check_branch
          %189 = sbr.rel (%p187) target = $region16
        $region15: #{tpu_custom_call.1} parent=11 // pred_region
          _
        $region16: #{tpu_custom_call.1} parent=11 // pred_fallthru
          _
        // Predicated region
        $region17: #{tpu_custom_call.1} parent=11 // pred_check
          %p190 = pneg %p83
        $region18: #{tpu_custom_call.1} parent=11 // pred_check_branch
          %192 = sbr.rel (%p190) target = $region20
        $region19: #{tpu_custom_call.1} parent=11 // pred_region
          _
        $region20: #{tpu_custom_call.1} parent=11 // pred_fallthru
          _
        // Predicated region
        $region21: #{tpu_custom_call.1} parent=11 // pred_check
          %p193 = pneg %p104
        $region22: #{tpu_custom_call.1} parent=11 // pred_check_branch
          %195 = sbr.rel (%p193) target = $region24
        $region23: #{tpu_custom_call.1} parent=11 // pred_region
          _
        $region24: #{tpu_custom_call.1} parent=11 // pred_fallthru
          _
        // Predicated region
        $region25: #{tpu_custom_call.1} parent=11 // pred_check
          %p196 = pneg %p125
        $region26: #{tpu_custom_call.1} parent=11 // pred_check_branch
          %198 = sbr.rel (%p196) target = $region28
        $region27: #{tpu_custom_call.1} parent=11 // pred_region
          _
        $region28: #{tpu_custom_call.1} parent=11 // pred_fallthru
          _
        // Predicated region
        $region29: #{tpu_custom_call.1} parent=11 // pred_check
          %p199 = pneg %p146
        $region30: #{tpu_custom_call.1} parent=11 // pred_check_branch
          %201 = sbr.rel (%p199) target = $region32
        $region31: #{tpu_custom_call.1} parent=11 // pred_region
          _
        $region32: #{tpu_custom_call.1} parent=11 // pred_fallthru
          _
      $region12: #{tpu_custom_call.1} parent=5 // pred_fallthru
        _
      %p202 = scmp.lt.s32.totalorder %s15, 2
      // Predicated region
      $region33: #{tpu_custom_call.1} parent=5 // pred_check
        %p203 = pneg %p202
      $region34: #{tpu_custom_call.1} parent=5 // pred_check_branch
        %205 = sbr.rel (%p203) target = $region36
      $region35: #{tpu_custom_call.1} parent=5 // pred_region
        // Predicated region
        $region37: #{tpu_custom_call.1} parent=35 // pred_check
          %p206 = pneg %p35
        $region38: #{tpu_custom_call.1} parent=35 // pred_check_branch
          %208 = sbr.rel (%p206) target = $region40
        $region39: #{tpu_custom_call.1} parent=35 // pred_region
          %p209 = scmp.lt.s32.totalorder %s15, 1
          %s210 = scalar_select %p209, %s15, 1
          %s211 = smul.addr %s210, 2
          %s212 = smul.addr %s211, 8
          %s213 = scalar_lea.vmem %s0, %s212
        $region40: #{tpu_custom_call.1} parent=35 // pred_fallthru
          _
      $region36: #{tpu_custom_call.1} parent=5 // pred_fallthru
        _
      %p214 = scmp.le.s32.totalorder 1, %s15
      %p215 = scmp.lt.s32.totalorder %s15, 3
      %p216 = pnand %p214, %p215
      %p217 = pneg %p216
      // Predicated region
      $region41: #{tpu_custom_call.1} parent=5 // pred_check
        _
      $region42: #{tpu_custom_call.1} parent=5 // pred_check_branch
        %219 = sbr.rel (%p216) target = $region44
      $region43: #{tpu_custom_call.1} parent=5 // pred_region
        %s220 = ssub.s32 %s15, 1
        %p221 = scmp.lt.s32.totalorder %s20, 1
        %s222 = scalar_select %p221, %s20, 1
        %s223 = smul.addr %s222, 2
        %s224 = smul.addr %s223, 8
        %s225 = scalar_lea.vmem %s0, %s224
        %p226 = pneg %p41
        %p227 = pneg %p38
        %p228 = pneg %p62
        %p229 = pneg %p59
        %p230 = pneg %p83
        %p231 = pneg %p80
        %p232 = pneg %p104
        %p233 = pneg %p101
        %p234 = pneg %p125
        %p235 = pneg %p122
        %p236 = pneg %p146
        %p237 = pneg %p143
        %p238 = pneg %p172
        %p239 = pneg %p169
        %s240 = sand.u32 %s159, 1
        %s241 = scalar_lea.sflag [#allocation3], %s240
        %s242 = sand.u32 %s159, 1
        %s243 = smul.addr %s242, 24
        %s244 = scalar_lea.vmem [#allocation2], %s243
        %p245 = scmp.lt.s32.totalorder %s20, 1
        %s246 = scalar_select %p245, %s20, 1
        %s247 = smul.addr %s246, 2
        %s248 = smul.addr %s247, 8
        %s249 = scalar_lea.vmem %s0, %s248
        %v250 = vld [vmem:[%s249] sm:$0xff]
        %v251 = vld [vmem:[%s249 + $0x8] sm:$0xff]
        %v252 = vld [vmem:[%s1] sm:$0xff]
        %v253 = vld [vmem:[%s1 + $0x8] sm:$0xff]
        %v254 = vld [vmem:[%s1 + $0x10] sm:$0xff]
        %v255 = vld [vmem:[%s1 + $0x18] sm:$0xff]
        %v256 = vld [vmem:[%s1 + $0x20] sm:$0xff]
        %v257 = vld [vmem:[%s1 + $0x28] sm:$0xff]
        %v258 = vld [vmem:[%s1 + $0x30] sm:$0xff]
        %v259 = vld [vmem:[%s1 + $0x38] sm:$0xff]
        %vm260 = vcmask 523264
        %v262 = vsel %vm260, %v250, 0
        %v265 = vsel %vm260, %v251, 0
        %267 = vmatpush.msra.mxu0 0.0
        %268 = vmatpush.msra.mxu0 0.0
        %269 = vmatpush.msra.mxu0 0.0
        %270 = vmatpush.msra.mxu0 0.0
        %271 = vmatpush.msra.mxu0 0.0
        %272 = vmatpush.msra.mxu0 0.0
        %273 = vmatpush.msra.mxu0 0.0
        %274 = vmatpush.msra.mxu0 0.0
        %275 = vmatpush.msra.mxu0 %v259
        %276 = vmatpush.msra.mxu0 %v258
        %277 = vmatpush.msra.mxu0 %v257
        %278 = vmatpush.msra.mxu0 %v256
        %279 = vmatpush.msra.mxu0 %v255
        %280 = vmatpush.msra.mxu0 %v254
        %281 = vmatpush.msra.mxu0 %v253
        %282 = vmatpush.msra.mxu0 %v252
        %283 = vmatmul.f32.gmra.mxu0 %v262
        %v284 = vpop.f32.mrf.mxu0
        %v285 = vadd.f32 0.0, %v284
        %286 = vmatmul.f32.gmra.mxu0 %v265
        %v287 = vpop.f32.mrf.mxu0
        %v288 = vadd.f32 0.0, %v287
        %289 = vdwg.mxu0
        %v290 = vld [vmem:[%s2] sm:$0x1]
        %vm293 = vcmask 1040384
        %v294 = vrot.slane %v285, 7
        %v295 = vrot.slane %v288, 7
        %v296 = vsel %vm293, %v294, %v295
        %v300 = vsel %vm293, %v290, %v294
        %v301 = vld [vmem:[%s3] sm:$0xff]
        %v302 = vld [vmem:[%s3 + $0x8] sm:$0xff]
        %v303 = vld [vmem:[%s3 + $0x10] sm:$0x1]
        %v304 = vadd.f32 %v300, %v301
        %v305 = vadd.f32 %v296, %v302
        %v306 = vadd.f32 %v295, %v303
        %v307 = vld [vmem:[%s4] sm:$0x1]
        %v308 = vld [vmem:[%s5] sm:$0x1]
        %vm309 = vcmask 261120
        %v310 = vsel %vm309, %v304, 0.0
        %311 = vadd.xlane.f32.xlu0 %v310
        %v312 = vpop.xlane.xlu0 %311
        %v313 = vsel %vm309, %v305, 0.0
        %314 = vadd.xlane.f32.xlu0 %v313
        %v315 = vpop.xlane.xlu0 %314
        %vm316 = vcmask 253952
        %v317 = vsel %vm316, %v306, 0.0
        %318 = vadd.xlane.f32.xlu0 %v317
        %v319 = vpop.xlane.xlu0 %318
        %v320 = vrcp.pop 32.0
        %v321 = vmul.f32 32.0, %v320
        %v322 = vsub.f32 1.0, %v321
        %v323 = vmul.f32 %v320, %v322
        %v324 = vadd.f32 %v320, %v323
        %vm325 = vweird.f32 %v320
        %v326 = vsel %vm325, %v320, %v324
        %v327 = vmul.f32 %v312, %v326
        %v328 = vmul.f32 %v315, %v326
        %v329 = vmul.f32 %v319, %v326
        %v330 = vsub.f32 %v304, %v327
        %v331 = vsub.f32 %v305, %v328
        %v332 = vsub.f32 %v306, %v329
        %v333 = vmul.f32 %v330, %v330
        %v334 = vmul.f32 %v331, %v331
        %v335 = vmul.f32 %v332, %v332
        %v336 = vsel %vm309, %v333, 0.0
        %337 = vadd.xlane.f32.xlu0 %v336
        %v338 = vpop.xlane.xlu0 %337
        %v339 = vsel %vm309, %v334, 0.0
        %340 = vadd.xlane.f32.xlu0 %v339
        %v341 = vpop.xlane.xlu0 %340
        %v342 = vsel %vm316, %v335, 0.0
        %343 = vadd.xlane.f32.xlu0 %v342
        %v344 = vpop.xlane.xlu0 %343
        %v345 = vmul.f32 %v338, %v326
        %v346 = vmul.f32 %v341, %v326
        %v347 = vmul.f32 %v344, %v326
        %v348 = vadd.f32 %v345, 1e-05
        %v349 = vadd.f32 %v346, 1e-05
        %v350 = vadd.f32 %v347, 1e-05
        %v351 = vrsqrt.pop %v348
        %v352 = vmul.f32 %v351, %v348
        %v353 = vmul.f32 %v352, %v351
        %v354 = vmul.f32 0.5, %v353
        %v355 = vsub.f32 1.5, %v354
        %v356 = vmul.f32 %v351, %v355
        %vm357 = vweird.f32 %v348
        %vm358 = vweird.f32 %v351
        %vm359 = vmor %vm357, %vm358
        %v360 = vsel %vm359, %v351, %v356
        %v361 = vrsqrt.pop %v349
        %v362 = vmul.f32 %v361, %v349
        %v363 = vmul.f32 %v362, %v361
        %v364 = vmul.f32 0.5, %v363
        %v365 = vsub.f32 1.5, %v364
        %v366 = vmul.f32 %v361, %v365
        %vm367 = vweird.f32 %v349
        %vm368 = vweird.f32 %v361
        %vm369 = vmor %vm367, %vm368
        %v370 = vsel %vm369, %v361, %v366
        %v371 = vrsqrt.pop %v350
        %v372 = vmul.f32 %v371, %v350
        %v373 = vmul.f32 %v372, %v371
        %v374 = vmul.f32 0.5, %v373
        %v375 = vsub.f32 1.5, %v374
        %v376 = vmul.f32 %v371, %v375
        %vm377 = vweird.f32 %v350
        %vm378 = vweird.f32 %v371
        %vm379 = vmor %vm377, %vm378
        %v380 = vsel %vm379, %v371, %v376
        %v381 = vmul.f32 %v330, %v360
        %v382 = vmul.f32 %v331, %v370
        %v383 = vmul.f32 %v332, %v380
        %v385 = vperm.slane %v307, 0
        %v387 = vmul.f32 %v381, %v385
        %v388 = vmul.f32 %v382, %v385
        %v389 = vmul.f32 %v383, %v385
        %v391 = vperm.slane %v308, 0
        %v393 = vadd.f32 %v387, %v391
        %v394 = vadd.f32 %v388, %v391
        %v395 = vadd.f32 %v389, %v391
        %v396 = vsel %vm293, %v395, 0.0
        %397 = vst.msk [vmem:[%s244] sm:$0xff] %vm309, %v393
        %398 = vst.msk [vmem:[%s244 + $0x8] sm:$0xff] %vm309, %v394
        %399 = vst.msk [vmem:[%s244 + $0x10] sm:$0xff] %vm309, %v396
        %s400 = sand.u32 %s159, 1
        %s401 = scalar_lea.sflag [#allocation3], %s400
        %s402 = sand.u32 %s159, 1
        %s403 = smul.addr %s402, 24
        %s404 = scalar_lea.vmem [#allocation2], %s403
        // Predicated region
        $region45: #{tpu_custom_call.1} parent=43 // pred_check
          %p405 = pneg %p169
        $region46: #{tpu_custom_call.1} parent=43 // pred_check_branch
          %407 = sbr.rel (%p405) target = $region48
        $region47: #{tpu_custom_call.1} parent=43 // pred_region
          %409 = vsyncadd %s401, 0
          %s410 = smul.addr %s20, 3
          %s411 = smul.addr %s410, 8
          %s412 = scalar_lea.hbm %s6, %s411
          %s413 = sshll.u32 %s404, 4
          %s414 = int_to_ptr.vmem [resolvable:$true] %s413
          %s415 = sshll.u32 %s412, 4
          %s416 = int_to_ptr.hbm [resolvable:$true] %s415
          %421 = dma.vmem_to_hbm [thread:$0]  %s414, 384, %s416, %s401, 128, 128, 8
        $region48: #{tpu_custom_call.1} parent=43 // pred_fallthru
          _
      $region44: #{tpu_custom_call.1} parent=5 // pred_fallthru
        _
      %p422 = scmp.le.s32.totalorder 2, %s15
      // Predicated region
      $region49: #{tpu_custom_call.1} parent=5 // pred_check
        %p423 = pneg %p422
      $region50: #{tpu_custom_call.1} parent=5 // pred_check_branch
        %425 = sbr.rel (%p423) target = $region52
      $region51: #{tpu_custom_call.1} parent=5 // pred_region
        %s426 = ssub.s32 %s15, 2
        // Predicated region
        $region53: #{tpu_custom_call.1} parent=51 // pred_check
          %p427 = pneg %p175
        $region54: #{tpu_custom_call.1} parent=51 // pred_check_branch
          %429 = sbr.rel (%p427) target = $region56
        $region55: #{tpu_custom_call.1} parent=51 // pred_region
          %s430 = sand.u32 %s160, 1
          %s431 = scalar_lea.sflag [#allocation3], %s430
          %s432 = sand.u32 %s160, 1
          %s433 = smul.addr %s432, 24
          %s434 = scalar_lea.vmem [#allocation2], %s433
          %436 = dma.done %s431, 384
        $region56: #{tpu_custom_call.1} parent=51 // pred_fallthru
          _
      $region52: #{tpu_custom_call.1} parent=5 // pred_fallthru
        _
    $region6: #{tpu_custom_call.1} parent=1 // loop_footer
      %s19 = sadd.s32 1, %s15
    $region7: #{tpu_custom_call.1} parent=1 // loop_footer_branch
      %14 = sbr.rel target = $region3
    $region8: #{tpu_custom_call.1} parent=1 // loop_exit
      _
    %437 = vsyncpa [#allocation3], 1
    %s438 = scalar_lea.sflag [#allocation3], 1
    %439 = vsyncpa %s438, 1

</llo_original>
